<compile_context>
chip_gen: v6e
topology: v6e:2x2x1
jax: 0.10.0
libtpu: 0.0.40
codegen_flags: <defaults>
</compile_context>

<pallas_src>
import functools

import jax
import jax.numpy as jnp
from jax.experimental import pallas as pl
from jax.experimental.pallas import tpu as pltpu

LANES = 128
SUBLANES = 8


def _cdiv(a, b):
    return -(-a // b)


def _round_up(a, b):
    return _cdiv(a, b) * b


def _device_config():
    """(num_cores, target_block_rows, vmem_limit_bytes) per TPU generation."""
    kind = ""
    try:
        kind = jax.devices()[0].device_kind.lower()
    except Exception:
        pass
    if "v7" in kind:
        # 2 TensorCores/chip, but only 64 MiB physical VMEM -> modest tiles.
        return 2, 2048, 32 * 1024 * 1024
    if "v6" in kind:
        # Single TC, 128 MiB VMEM: bigger tiles, raise the scoped limit.
        return 1, 4096, 48 * 1024 * 1024
    # v5e (16 MiB default scoped limit) and anything unknown: stay modest.
    return 1, 2048, 32 * 1024 * 1024


def _weighted_loss_kernel(clean_ref, ann_ref, pred_ref, num_ref, msk_ref, *,
                          alpha, beta, blocks_per_core, block_rows, n_rows):
    core = pl.program_id(0)
    i = pl.program_id(1)

    @pl.when(i == 0)
    def _():
        num_ref[...] = jnp.zeros_like(num_ref)
        msk_ref[...] = jnp.zeros_like(msk_ref)

    c_raw = clean_ref[...]
    a_raw = ann_ref[...]
    c = c_raw.astype(jnp.float32)
    p = pred_ref[...].astype(jnp.float32)

    diff = c - p
    err = diff * diff
    mask = (a_raw != c_raw).astype(jnp.float32)
    # weight_map = alpha*mask + beta*(1-mask) = beta + (alpha-beta)*mask
    w_err = (jnp.float32(beta) + jnp.float32(alpha - beta) * mask) * err

    groups = block_rows // SUBLANES

    def vreg_sum(x):
        # (block_rows, 128) -> (8, 128): layout-preserving reshape + elementwise
        # vreg adds (pure VPU, no XLU).
        return x.reshape(groups, SUBLANES, LANES).sum(axis=0)

    start_row = (core * blocks_per_core + i) * block_rows
    rows_valid = n_rows - start_row

    @pl.when(rows_valid >= block_rows)
    def _():  # hot path: fully valid block, no masking work at all
        num_ref[...] += vreg_sum(w_err)
        msk_ref[...] += vreg_sum(mask)

    @pl.when(rows_valid < block_rows)
    def _():  # ragged trailing block / out-of-range (clamped) step
        row = jax.lax.broadcasted_iota(jnp.int32, (block_rows, LANES), 0)
        valid = row < rows_valid
        num_ref[...] += vreg_sum(jnp.where(valid, w_err, 0.0))
        msk_ref[...] += vreg_sum(jnp.where(valid, mask, 0.0))


def weighted_loss(clean, annotated, predicted, alpha=5.0, beta=1.0):
    assert clean.shape == annotated.shape == predicted.shape
    n_valid = int(clean.size)

    num_cores, target_rows, vmem_limit = _device_config()

    # Lane/sublane-dense layout: flatten (free) and, only when required,
    # zero-pad to a multiple of 8*128 so n_rows is a multiple of 8.
    n_padded = _round_up(n_valid, SUBLANES * LANES)
    pad = n_padded - n_valid
    n_rows = n_padded // LANES            # multiple of 8

    block_rows = min(target_rows, n_rows)
    n_blocks = _cdiv(n_rows, block_rows)
    num_cores = min(num_cores, n_blocks)
    blocks_per_core = _cdiv(n_blocks, num_cores)

    def to_slab(x):
        x = jnp.ravel(x)                  # native dtype: no cast, no copy
        if pad:
            x = jnp.concatenate([x, jnp.zeros((pad,), x.dtype)])
        return x.reshape(n_rows, LANES)

    c2, a2, p2 = to_slab(clean), to_slab(annotated), to_slab(predicted)

    def in_map(ci, ii):
        # Clamp so a replayed final step on a core maps to the SAME block as
        # its previous step -> the pipeline elides the duplicate DMA; its
        # contribution is masked to zero inside the kernel.
        return (jnp.minimum(ci * blocks_per_core + ii, n_blocks - 1), 0)

    def out_map(ci, ii):
        return (ci, 0)                    # resident across the reduction axis

    kernel = functools.partial(
        _weighted_loss_kernel,
        alpha=float(alpha), beta=float(beta),
        blocks_per_core=blocks_per_core,
        block_rows=block_rows, n_rows=n_rows)

    num_part, msk_part = pl.pallas_call(
        kernel,
        out_shape=(
            jax.ShapeDtypeStruct((num_cores * SUBLANES, LANES), jnp.float32),
            jax.ShapeDtypeStruct((num_cores * SUBLANES, LANES), jnp.float32),
        ),
        grid_spec=pltpu.PrefetchScalarGridSpec(
            num_scalar_prefetch=0,
            grid=(num_cores, blocks_per_core),
            in_specs=[
                pl.BlockSpec((block_rows, LANES), in_map),
                pl.BlockSpec((block_rows, LANES), in_map),
                pl.BlockSpec((block_rows, LANES), in_map),
            ],
            out_specs=[
                pl.BlockSpec((SUBLANES, LANES), out_map),
                pl.BlockSpec((SUBLANES, LANES), out_map),
            ],
        ),
        compiler_params=pltpu.CompilerParams(
            dimension_semantics=("parallel", "arbitrary"),
            vmem_limit_bytes=vmem_limit),
    )(c2, a2, p2)

    num = jnp.sum(num_part)
    mask_sum = jnp.sum(msk_part)
    # den = sum(weight_map) = beta * n_valid + (alpha - beta) * sum(mask);
    # padded elements have mask == 0 and are excluded via n_valid.
    den = jnp.float32(beta) * jnp.float32(n_valid) \
        + jnp.float32(alpha - beta) * mask_sum
    return num / den


def weighted_loss_ref(clean, annotated, predicted, alpha=5.0, beta=1.0):
    arrow_mask = (annotated != clean).astype(jnp.float32)
    weight_map = alpha * arrow_mask + beta * (1.0 - arrow_mask)
    pixel_wise_error = (clean.astype(jnp.float32)
                        - predicted.astype(jnp.float32)) ** 2
    return jnp.sum(weight_map * pixel_wise_error) / jnp.sum(weight_map)


if __name__ == "__main__":
    key = jax.random.PRNGKey(0)
    k1, k2, k3 = jax.random.split(key, 3)

    B, C, H, W = 2, 4, 16, 16  # NCHW, matching the PyTorch convention
    clean = jax.random.normal(k1, (B, C, H, W), dtype=jnp.float32)
    predicted = clean + 0.1 * jax.random.normal(k2, (B, C, H, W), dtype=jnp.float32)
    # annotated equals clean except on a deterministic random subset of pixels
    # ("arrows"), where it is perturbed -> (annotated != clean) mask is nontrivial.
    flip = jax.random.bernoulli(k3, p=0.2, shape=(B, C, H, W))
    annotated = jnp.where(flip, clean + 1.0, clean)

    loss = weighted_loss(clean, annotated, predicted)
    loss = jax.block_until_ready(loss)

    ref = weighted_loss_ref(clean, annotated, predicted)
    assert jnp.allclose(loss, ref, rtol=1e-5, atol=1e-6), (loss, ref)

    print("KERNEL_OK")
</pallas_src>

<mosaic_0001>
module attributes {stable_mosaic.version = 11 : i64} {
  func.func @_weighted_loss_kernel(%arg0: i32, %arg1: i32, %arg2: memref<16x128xf32, #tpu.memory_space<vmem>>, %arg3: memref<16x128xf32, #tpu.memory_space<vmem>>, %arg4: memref<16x128xf32, #tpu.memory_space<vmem>>, %arg5: memref<8x128xf32, #tpu.memory_space<vmem>>, %arg6: memref<8x128xf32, #tpu.memory_space<vmem>>) attributes {dimension_semantics = [#tpu.dimension_semantics<parallel>, #tpu.dimension_semantics<arbitrary>], iteration_bounds = array<i64: 1, 1>, scalar_prefetch = 0 : i64, scratch_operands = 0 : i64, tpu.core_type = #tpu.core_type<tc>, window_params = [{transform_indices = @transform_0, window_bounds = array<i64: 16, 128>}, {transform_indices = @transform_1, window_bounds = array<i64: 16, 128>}, {transform_indices = @transform_2, window_bounds = array<i64: 16, 128>}, {transform_indices = @transform_3, window_bounds = array<i64: 8, 128>}, {transform_indices = @transform_4, window_bounds = array<i64: 8, 128>}]} {
    %c0_i32 = arith.constant 0 : i32
    %0 = arith.cmpi eq, %arg1, %c0_i32 : i32
    %1 = arith.extui %0 : i1 to i32
    %c0_i32_0 = arith.constant 0 : i32
    %2 = arith.cmpi ne, %1, %c0_i32_0 : i32
    scf.if %2 {
      %cst_12 = arith.constant 0.000000e+00 : f32
      %26 = vector.broadcast %cst_12 : f32 to vector<8x128xf32>
      %c0_13 = arith.constant 0 : index
      %c0_14 = arith.constant 0 : index
      %27 = vector.load %arg5[%c0_13, %c0_14] : memref<8x128xf32, #tpu.memory_space<vmem>>, vector<8x128xf32>
      tpu.vector_store %arg5[%c0_13, %c0_14], %26 {strides = array<i32>} : memref<8x128xf32, #tpu.memory_space<vmem>>, vector<8x128xf32>,
      %cst_15 = arith.constant 0.000000e+00 : f32
      %28 = vector.broadcast %cst_15 : f32 to vector<8x128xf32>
      %c0_16 = arith.constant 0 : index
      %c0_17 = arith.constant 0 : index
      %29 = vector.load %arg6[%c0_16, %c0_17] : memref<8x128xf32, #tpu.memory_space<vmem>>, vector<8x128xf32>
      tpu.vector_store %arg6[%c0_16, %c0_17], %28 {strides = array<i32>} : memref<8x128xf32, #tpu.memory_space<vmem>>, vector<8x128xf32>,
    } else {
    }
    %c0 = arith.constant 0 : index
    %c0_1 = arith.constant 0 : index
    %3 = vector.load %arg2[%c0, %c0_1] : memref<16x128xf32, #tpu.memory_space<vmem>>, vector<16x128xf32>
    %c0_2 = arith.constant 0 : index
    %c0_3 = arith.constant 0 : index
    %4 = vector.load %arg3[%c0_2, %c0_3] : memref<16x128xf32, #tpu.memory_space<vmem>>, vector<16x128xf32>
    %c0_4 = arith.constant 0 : index
    %c0_5 = arith.constant 0 : index
    %5 = vector.load %arg4[%c0_4, %c0_5] : memref<16x128xf32, #tpu.memory_space<vmem>>, vector<16x128xf32>
    %6 = arith.subf %3, %5 : vector<16x128xf32>
    %7 = arith.mulf %6, %6 : vector<16x128xf32>
    %8 = arith.cmpf one, %4, %3 : vector<16x128xf32>
    %9 = arith.extui %8 : vector<16x128xi1> to vector<16x128xi32>
    %10 = arith.sitofp %9 : vector<16x128xi32> to vector<16x128xf32>
    %cst = arith.constant 4.000000e+00 : f32
    %11 = vector.broadcast %cst : f32 to vector<16x128xf32>
    %12 = arith.mulf %11, %10 : vector<16x128xf32>
    %cst_6 = arith.constant 1.000000e+00 : f32
    %13 = vector.broadcast %cst_6 : f32 to vector<16x128xf32>
    %14 = arith.addf %13, %12 : vector<16x128xf32>
    %15 = arith.mulf %14, %7 : vector<16x128xf32>
    %c1_i32 = arith.constant 1 : i32
    %16 = arith.muli %arg0, %c1_i32 : i32
    %17 = arith.addi %16, %arg1 : i32
    %c16_i32 = arith.constant 16 : i32
    %18 = arith.muli %17, %c16_i32 : i32
    %c16_i32_7 = arith.constant 16 : i32
    %19 = arith.subi %c16_i32_7, %18 : i32
    %c16_i32_8 = arith.constant 16 : i32
    %20 = arith.cmpi sge, %19, %c16_i32_8 : i32
    %21 = arith.extui %20 : i1 to i32
    %c0_i32_9 = arith.constant 0 : i32
    %22 = arith.cmpi ne, %21, %c0_i32_9 : i32
    scf.if %22 {
      %c0_12 = arith.constant 0 : index
      %c0_13 = arith.constant 0 : index
      %26 = vector.load %arg5[%c0_12, %c0_13] : memref<8x128xf32, #tpu.memory_space<vmem>>, vector<8x128xf32>
      %27 = vector.shape_cast %15 : vector<16x128xf32> to vector<2x8x128xf32>
      %cst_14 = arith.constant dense<0.000000e+00> : vector<8x128xf32>
      %28 = vector.multi_reduction <add>, %27, %cst_14 [0] : vector<2x8x128xf32> to vector<8x128xf32>
      %29 = arith.addf %26, %28 : vector<8x128xf32>
      %c0_15 = arith.constant 0 : index
      %c0_16 = arith.constant 0 : index
      %30 = vector.load %arg5[%c0_15, %c0_16] : memref<8x128xf32, #tpu.memory_space<vmem>>, vector<8x128xf32>
      tpu.vector_store %arg5[%c0_15, %c0_16], %29 {strides = array<i32>} : memref<8x128xf32, #tpu.memory_space<vmem>>, vector<8x128xf32>,
      %c0_17 = arith.constant 0 : index
      %c0_18 = arith.constant 0 : index
      %31 = vector.load %arg6[%c0_17, %c0_18] : memref<8x128xf32, #tpu.memory_space<vmem>>, vector<8x128xf32>
      %32 = vector.shape_cast %10 : vector<16x128xf32> to vector<2x8x128xf32>
      %cst_19 = arith.constant dense<0.000000e+00> : vector<8x128xf32>
      %33 = vector.multi_reduction <add>, %32, %cst_19 [0] : vector<2x8x128xf32> to vector<8x128xf32>
      %34 = arith.addf %31, %33 : vector<8x128xf32>
      %c0_20 = arith.constant 0 : index
      %c0_21 = arith.constant 0 : index
      %35 = vector.load %arg6[%c0_20, %c0_21] : memref<8x128xf32, #tpu.memory_space<vmem>>, vector<8x128xf32>
      tpu.vector_store %arg6[%c0_20, %c0_21], %34 {strides = array<i32>} : memref<8x128xf32, #tpu.memory_space<vmem>>, vector<8x128xf32>,
    } else {
    }
    %c16_i32_10 = arith.constant 16 : i32
    %23 = arith.cmpi slt, %19, %c16_i32_10 : i32
    %24 = arith.extui %23 : i1 to i32
    %c0_i32_11 = arith.constant 0 : i32
    %25 = arith.cmpi ne, %24, %c0_i32_11 : i32
    scf.if %25 {
      %26 = tpu.iota {dimensions = array<i32: 0>} : vector<16x128xi32>
      %27 = vector.broadcast %19 : i32 to vector<16x128xi32>
      %28 = arith.cmpi slt, %26, %27 : vector<16x128xi32>
      %c0_12 = arith.constant 0 : index
      %c0_13 = arith.constant 0 : index
      %29 = vector.load %arg5[%c0_12, %c0_13] : memref<8x128xf32, #tpu.memory_space<vmem>>, vector<8x128xf32>
      %cst_14 = arith.constant 0.000000e+00 : f32
      %30 = vector.broadcast %cst_14 : f32 to vector<16x128xf32>
      %31 = arith.select %28, %15, %30 : vector<16x128xi1>, vector<16x128xf32>
      %32 = vector.shape_cast %31 : vector<16x128xf32> to vector<2x8x128xf32>
      %cst_15 = arith.constant dense<0.000000e+00> : vector<8x128xf32>
      %33 = vector.multi_reduction <add>, %32, %cst_15 [0] : vector<2x8x128xf32> to vector<8x128xf32>
      %34 = arith.addf %29, %33 : vector<8x128xf32>
      %c0_16 = arith.constant 0 : index
      %c0_17 = arith.constant 0 : index
      %35 = vector.load %arg5[%c0_16, %c0_17] : memref<8x128xf32, #tpu.memory_space<vmem>>, vector<8x128xf32>
      tpu.vector_store %arg5[%c0_16, %c0_17], %34 {strides = array<i32>} : memref<8x128xf32, #tpu.memory_space<vmem>>, vector<8x128xf32>,
      %c0_18 = arith.constant 0 : index
      %c0_19 = arith.constant 0 : index
      %36 = vector.load %arg6[%c0_18, %c0_19] : memref<8x128xf32, #tpu.memory_space<vmem>>, vector<8x128xf32>
      %cst_20 = arith.constant 0.000000e+00 : f32
      %37 = vector.broadcast %cst_20 : f32 to vector<16x128xf32>
      %38 = arith.select %28, %10, %37 : vector<16x128xi1>, vector<16x128xf32>
      %39 = vector.shape_cast %38 : vector<16x128xf32> to vector<2x8x128xf32>
      %cst_21 = arith.constant dense<0.000000e+00> : vector<8x128xf32>
      %40 = vector.multi_reduction <add>, %39, %cst_21 [0] : vector<2x8x128xf32> to vector<8x128xf32>
      %41 = arith.addf %36, %40 : vector<8x128xf32>
      %c0_22 = arith.constant 0 : index
      %c0_23 = arith.constant 0 : index
      %42 = vector.load %arg6[%c0_22, %c0_23] : memref<8x128xf32, #tpu.memory_space<vmem>>, vector<8x128xf32>
      tpu.vector_store %arg6[%c0_22, %c0_23], %41 {strides = array<i32>} : memref<8x128xf32, #tpu.memory_space<vmem>>, vector<8x128xf32>,
    } else {
    }
    return
  }
  func.func @transform_0(%arg0: i32, %arg1: i32) -> (i32, i32) {
    %c1_i32 = arith.constant 1 : i32
    %0 = arith.muli %arg0, %c1_i32 : i32
    %1 = arith.addi %0, %arg1 : i32
    %c0_i32 = arith.constant 0 : i32
    %2 = arith.minsi %1, %c0_i32 : i32
    %c0_i32_0 = arith.constant 0 : i32
    %c0_i32_1 = arith.constant 0 : i32
    return %2, %c0_i32_0 : i32, i32
  }
  func.func @transform_1(%arg0: i32, %arg1: i32) -> (i32, i32) {
    %c1_i32 = arith.constant 1 : i32
    %0 = arith.muli %arg0, %c1_i32 : i32
    %1 = arith.addi %0, %arg1 : i32
    %c0_i32 = arith.constant 0 : i32
    %2 = arith.minsi %1, %c0_i32 : i32
    %c0_i32_0 = arith.constant 0 : i32
    %c0_i32_1 = arith.constant 0 : i32
    return %2, %c0_i32_0 : i32, i32
  }
  func.func @transform_2(%arg0: i32, %arg1: i32) -> (i32, i32) {
    %c1_i32 = arith.constant 1 : i32
    %0 = arith.muli %arg0, %c1_i32 : i32
    %1 = arith.addi %0, %arg1 : i32
    %c0_i32 = arith.constant 0 : i32
    %2 = arith.minsi %1, %c0_i32 : i32
    %c0_i32_0 = arith.constant 0 : i32
    %c0_i32_1 = arith.constant 0 : i32
    return %2, %c0_i32_0 : i32, i32
  }
  func.func @transform_3(%arg0: i32, %arg1: i32) -> (i32, i32) {
    %c0_i32 = arith.constant 0 : i32
    %c0_i32_0 = arith.constant 0 : i32
    return %arg0, %c0_i32 : i32, i32
  }
  func.func @transform_4(%arg0: i32, %arg1: i32) -> (i32, i32) {
    %c0_i32 = arith.constant 0 : i32
    %c0_i32_0 = arith.constant 0 : i32
    return %arg0, %c0_i32 : i32, i32
  }
}

</mosaic_0001>

<llo_original>
// kernel: tpu_custom_call.1
$region0: #{tpu_custom_call.1}
  #allocation0 [shape = 'u32[]', space=smem, size = 0x4, offset = 0x4, fixed_abs, tag = 'smem constant byte address 0x4 - core index']
  #allocation1 [shape = 'u32[144,128]{1,0:T(1,128)}', space=vmem, size = 0x12000, scoped, tag = 'internal scratch']
  %s0 = inlined_call_operand.hbm [shape: f32[16,128], index: 0, kind: input, shape index: {}]
  %s1 = inlined_call_operand.hbm [shape: f32[16,128], index: 1, kind: input, shape index: {}]
  %s2 = inlined_call_operand.hbm [shape: f32[16,128], index: 2, kind: input, shape index: {}]
  %s3 = inlined_call_operand.hbm [shape: f32[8,128], index: 3, kind: output, shape index: {0}]
  %s4 = inlined_call_operand.hbm [shape: f32[8,128], index: 4, kind: output, shape index: {1}]
  %5 = xla_tuple %s3, %s4
  %s6 = sld [smem:[#allocation0]]
  $region54: #{tpu_custom_call.1} parent=0
    _
  %s8 = ssub.s32 1, %s6
  %s9 = scalar_select 0, %s8, %s6
  $region1: #{tpu_custom_call.1} parent=0
    #allocation2 [shape = 'u8[8192]{0}', space=vmem, size = 0x2000, scoped, tag = 'input window, operand 0, single buffered']
    #allocation3 [shape = 's32[1]{0}', space=sflag, size = 0x4, scoped, tag = 'scoped memory for tpu_custom_call.1']
    #allocation4 [shape = 's32[1]{0}', space=sflag, size = 0x4, scoped, tag = 'scoped memory for tpu_custom_call.1']
    #allocation5 [shape = 'u8[8192]{0}', space=vmem, size = 0x2000, scoped, tag = 'input window, operand 1, single buffered']
    #allocation6 [shape = 's32[1]{0}', space=sflag, size = 0x4, scoped, tag = 'scoped memory for tpu_custom_call.1']
    #allocation7 [shape = 'u8[8192]{0}', space=vmem, size = 0x2000, scoped, tag = 'input window, operand 2, single buffered']
    #allocation8 [shape = 'u8[4096]{0}', space=vmem, size = 0x1000, scoped, tag = 'output window, operand 0, single buffered']
    #allocation9 [shape = 'u8[4096]{0}', space=vmem, size = 0x1000, scoped, tag = 'output window, operand 1, single buffered']
    #allocation10 [shape = 's32[1]{0}', space=sflag, size = 0x4, scoped, tag = 'scoped memory for tpu_custom_call.1']
    %10 = vsyncpa [#allocation3], 0
    %11 = vsyncpa [#allocation6], 0
    %12 = vsyncpa [#allocation4], 0
    %13 = vsyncpa [#allocation10], 0
    // Predicated region
    $region2: #{tpu_custom_call.1} parent=1 // pred_check
      _
    $region3: #{tpu_custom_call.1} parent=1 // pred_check_branch
      %15 = sbr.rel (0) target = $region5
    $region4: #{tpu_custom_call.1} parent=1 // pred_region
      %s16 = sadd.s32 0, 0
      %p17 = scmp.lt.s32.totalorder %s16, 0
      %s18 = scalar_select %p17, %s16, 0
      %s19 = smul.u32 2, %s18
      %s21 = ssub.s32 256, 256
      %22 = vsyncadd [#allocation3], %s21
      %s23 = smul.addr %s19, 128
      %s24 = scalar_lea.hbm %s0, %s23
      %s25 = sshll.u32 [#allocation2], 4
      %s26 = int_to_ptr.vmem [resolvable:$true] %s25
      %31 = dma.hbm_to_vmem [thread:$0]  %s24, 256, %s26, [#allocation3], 128, 128, 8
    $region5: #{tpu_custom_call.1} parent=1 // pred_fallthru
      _
    // Predicated region
    $region6: #{tpu_custom_call.1} parent=1 // pred_check
      _
    $region7: #{tpu_custom_call.1} parent=1 // pred_check_branch
      %33 = sbr.rel (0) target = $region9
    $region8: #{tpu_custom_call.1} parent=1 // pred_region
      %s34 = sadd.s32 0, 0
      %p35 = scmp.lt.s32.totalorder %s34, 0
      %s36 = scalar_select %p35, %s34, 0
      %s37 = smul.u32 2, %s36
      %s39 = ssub.s32 256, 256
      %40 = vsyncadd [#allocation6], %s39
      %s41 = smul.addr %s37, 128
      %s42 = scalar_lea.hbm %s1, %s41
      %s43 = sshll.u32 [#allocation5], 4
      %s44 = int_to_ptr.vmem [resolvable:$true] %s43
      %49 = dma.hbm_to_vmem [thread:$0]  %s42, 256, %s44, [#allocation6], 128, 128, 8
    $region9: #{tpu_custom_call.1} parent=1 // pred_fallthru
      _
    // Predicated region
    $region10: #{tpu_custom_call.1} parent=1 // pred_check
      _
    $region11: #{tpu_custom_call.1} parent=1 // pred_check_branch
      %51 = sbr.rel (0) target = $region13
    $region12: #{tpu_custom_call.1} parent=1 // pred_region
      %s52 = sadd.s32 0, 0
      %p53 = scmp.lt.s32.totalorder %s52, 0
      %s54 = scalar_select %p53, %s52, 0
      %s55 = smul.u32 2, %s54
      %s57 = ssub.s32 256, 256
      %58 = vsyncadd [#allocation6], %s57
      %s59 = smul.addr %s55, 128
      %s60 = scalar_lea.hbm %s2, %s59
      %s61 = sshll.u32 [#allocation7], 4
      %s62 = int_to_ptr.vmem [resolvable:$true] %s61
      %67 = dma.hbm_to_vmem [thread:$0]  %s60, 256, %s62, [#allocation6], 128, 128, 8
    $region13: #{tpu_custom_call.1} parent=1 // pred_fallthru
      _
    // Predicated region
    $region14: #{tpu_custom_call.1} parent=1 // pred_check
      _
    $region15: #{tpu_custom_call.1} parent=1 // pred_check_branch
      %69 = sbr.rel (0) target = $region17
    $region16: #{tpu_custom_call.1} parent=1 // pred_region
      %70 = dma.done [#allocation3], 256
    $region17: #{tpu_custom_call.1} parent=1 // pred_fallthru
      _
    // Predicated region
    $region18: #{tpu_custom_call.1} parent=1 // pred_check
      _
    $region19: #{tpu_custom_call.1} parent=1 // pred_check_branch
      %72 = sbr.rel (0) target = $region21
    $region20: #{tpu_custom_call.1} parent=1 // pred_region
      %73 = dma.done [#allocation6], 256
    $region21: #{tpu_custom_call.1} parent=1 // pred_fallthru
      _
    // Predicated region
    $region22: #{tpu_custom_call.1} parent=1 // pred_check
      _
    $region23: #{tpu_custom_call.1} parent=1 // pred_check_branch
      %75 = sbr.rel (0) target = $region25
    $region24: #{tpu_custom_call.1} parent=1 // pred_region
      %76 = dma.done [#allocation6], 256
    $region25: #{tpu_custom_call.1} parent=1 // pred_fallthru
      _
    %s77 = sadd.s32 0, 0
    %p78 = scmp.lt.s32.totalorder %s77, 0
    %s79 = scalar_select %p78, %s77, 0
    %s80 = smul.u32 2, %s79
    %s81 = sadd.s32 0, 0
    %p82 = scmp.lt.s32.totalorder %s81, 0
    %s83 = scalar_select %p82, %s81, 0
    %s84 = smul.u32 2, %s83
    %s85 = sadd.s32 0, 0
    %p86 = scmp.lt.s32.totalorder %s85, 0
    %s87 = scalar_select %p86, %s85, 0
    %s88 = smul.u32 2, %s87
    %p89 = scmp.eq.s32.totalorder 0, 0
    // Predicated region
    $region26: #{tpu_custom_call.1} parent=1 // pred_check
      %p90 = pneg %p89
    $region27: #{tpu_custom_call.1} parent=1 // pred_check_branch
      %92 = sbr.rel (%p90) target = $region29
    $region28: #{tpu_custom_call.1} parent=1 // pred_region
      %93 = vst [vmem:[#allocation8] sm:$0xff] 0.0
      %94 = vst [vmem:[#allocation9] sm:$0xff] 0.0
    $region29: #{tpu_custom_call.1} parent=1 // pred_fallthru
      _
    %v95 = vld [vmem:[#allocation2] sm:$0xff]
    %v96 = vld [vmem:[#allocation2 + $0x8] sm:$0xff]
    %v97 = vld [vmem:[#allocation5] sm:$0xff]
    %v98 = vld [vmem:[#allocation5 + $0x8] sm:$0xff]
    %v99 = vld [vmem:[#allocation7] sm:$0xff]
    %v100 = vld [vmem:[#allocation7 + $0x8] sm:$0xff]
    %v101 = vsub.f32 %v95, %v99
    %v102 = vsub.f32 %v96, %v100
    %v103 = vmul.f32 %v101, %v101
    %v104 = vmul.f32 %v102, %v102
    %vm105 = vcmp.ne.f32.partialorder %v97, %v95
    %vm106 = vcmp.ne.f32.partialorder %v98, %v96
    %v107 = vsel %vm105, 1, 0
    %v108 = vsel %vm106, 1, 0
    %v109 = vcvt.s32.f32 %v107
    %v110 = vcvt.s32.f32 %v108
    %v111 = vmul.f32 %v109, 4.0
    %v112 = vmul.f32 %v110, 4.0
    %v113 = vadd.f32 %v111, 1.0
    %v114 = vadd.f32 %v112, 1.0
    %v115 = vmul.f32 %v113, %v103
    %v116 = vmul.f32 %v114, %v104
    %s117 = sadd.s32 0, 0
    %s118 = smul.u32 %s117, 16
    %s119 = ssub.s32 16, %s118
    %p120 = scmp.ge.s32.totalorder %s119, 16
    // Predicated region
    $region30: #{tpu_custom_call.1} parent=1 // pred_check
      %p121 = pneg %p120
    $region31: #{tpu_custom_call.1} parent=1 // pred_check_branch
      %123 = sbr.rel (%p121) target = $region33
    $region32: #{tpu_custom_call.1} parent=1 // pred_region
      %v124 = vld [vmem:[#allocation8] sm:$0xff]
      %v125 = vadd.f32 %v115, %v116
      %v126 = vadd.f32 %v124, %v125
      %127 = vst [vmem:[#allocation8] sm:$0xff] %v126
      %v128 = vld [vmem:[#allocation9] sm:$0xff]
      %v129 = vadd.f32 %v109, %v110
      %v130 = vadd.f32 %v128, %v129
      %131 = vst [vmem:[#allocation9] sm:$0xff] %v130
    $region33: #{tpu_custom_call.1} parent=1 // pred_fallthru
      _
    %p132 = scmp.lt.s32.totalorder %s119, 16
    // Predicated region
    $region34: #{tpu_custom_call.1} parent=1 // pred_check
      %p133 = pneg %p132
    $region35: #{tpu_custom_call.1} parent=1 // pred_check_branch
      %135 = sbr.rel (%p133) target = $region37
    $region36: #{tpu_custom_call.1} parent=1 // pred_region
      %v136 = vlaneseq
      %v137 = vshrl.u32 %v136, 7
      %v138 = vadd.s32 %v137, 8
      %v139 = vstv %s119
      %vm140 = vcmp.lt.s32.totalorder %v137, %v139
      %vm141 = vcmp.lt.s32.totalorder %v138, %v139
      %v142 = vld [vmem:[#allocation8] sm:$0xff]
      %v143 = vsel %vm140, %v115, 0.0
      %v144 = vsel %vm141, %v116, 0.0
      %v145 = vadd.f32 %v143, %v144
      %v146 = vadd.f32 %v142, %v145
      %147 = vst [vmem:[#allocation8] sm:$0xff] %v146
      %v148 = vld [vmem:[#allocation9] sm:$0xff]
      %v149 = vsel %vm140, %v109, 0.0
      %v150 = vsel %vm141, %v110, 0.0
      %v151 = vadd.f32 %v149, %v150
      %v152 = vadd.f32 %v148, %v151
      %153 = vst [vmem:[#allocation9] sm:$0xff] %v152
    $region37: #{tpu_custom_call.1} parent=1 // pred_fallthru
      _
    // Predicated region
    $region38: #{tpu_custom_call.1} parent=1 // pred_check
      _
    $region39: #{tpu_custom_call.1} parent=1 // pred_check_branch
      %155 = sbr.rel (0) target = $region41
    $region40: #{tpu_custom_call.1} parent=1 // pred_region
      %s157 = ssub.s32 128, 128
      %158 = vsyncadd [#allocation4], %s157
      %s160 = sshll.u32 [#allocation8], 4
      %s161 = int_to_ptr.vmem [resolvable:$true] %s160
      %163 = dma.vmem_to_hbm [thread:$0]  %s161, 128, %s3, [#allocation4]
    $region41: #{tpu_custom_call.1} parent=1 // pred_fallthru
      _
    // Predicated region
    $region42: #{tpu_custom_call.1} parent=1 // pred_check
      _
    $region43: #{tpu_custom_call.1} parent=1 // pred_check_branch
      %165 = sbr.rel (0) target = $region45
    $region44: #{tpu_custom_call.1} parent=1 // pred_region
      %s167 = ssub.s32 128, 128
      %168 = vsyncadd [#allocation10], %s167
      %s170 = sshll.u32 [#allocation9], 4
      %s171 = int_to_ptr.vmem [resolvable:$true] %s170
      %173 = dma.vmem_to_hbm [thread:$0]  %s171, 128, %s4, [#allocation10]
    $region45: #{tpu_custom_call.1} parent=1 // pred_fallthru
      _
    // Predicated region
    $region46: #{tpu_custom_call.1} parent=1 // pred_check
      _
    $region47: #{tpu_custom_call.1} parent=1 // pred_check_branch
      %175 = sbr.rel (0) target = $region49
    $region48: #{tpu_custom_call.1} parent=1 // pred_region
      %176 = dma.done [#allocation4], 128
    $region49: #{tpu_custom_call.1} parent=1 // pred_fallthru
      _
    // Predicated region
    $region50: #{tpu_custom_call.1} parent=1 // pred_check
      _
    $region51: #{tpu_custom_call.1} parent=1 // pred_check_branch
      %178 = sbr.rel (0) target = $region53
    $region52: #{tpu_custom_call.1} parent=1 // pred_region
      %179 = dma.done [#allocation10], 128
    $region53: #{tpu_custom_call.1} parent=1 // pred_fallthru
      _
    %180 = vsyncpa [#allocation3], 1
    %181 = vsyncpa [#allocation6], 1
    %182 = vsyncpa [#allocation4], 1
    %183 = vsyncpa [#allocation10], 1

</llo_original>
